<compile_context>
chip_gen: v6e
topology: v6e:2x2x1
jax: 0.10.0
libtpu: 0.0.40
codegen_flags: <defaults>
</compile_context>

<pallas_src>
import functools

import jax
import jax.numpy as jnp
from jax import lax
from jax.experimental import pallas as pl
from jax.experimental.pallas import tpu as pltpu


def apn_head_kernel(x_ref, w_ref, b_cls_ref, coral_bias_ref,
                    cls_out_ref, reg_out_ref, acc_ref,
                    *, inv_s, s_total, tile_s, num_classes, mask_tail):
    si = pl.program_id(1)  # S (reduction) axis, last in the grid

    # --- init the pool accumulator at the first S step -----------------------
    @pl.when(si == 0)
    def _init():
        acc_ref[...] = jnp.zeros_like(acc_ref)

    # --- accumulate the global-average-pool sum over this S block ------------
    x = x_ref[...].astype(jnp.float32)            # (tile_n, tile_s, C)
    if mask_tail:
        # Tail S block: zero out the out-of-range positions so padded garbage
        # never contaminates the sum.
        pos = si * tile_s + lax.broadcasted_iota(jnp.int32, x.shape, 1)
        x = jnp.where(pos < s_total, x, 0.0)
    acc_ref[...] += jnp.sum(x, axis=1)            # (tile_n, C), f32

    # --- finalize: scale by 1/S, fused head matmul, bias adds ----------------
    @pl.when(si == pl.num_programs(1) - 1)
    def _finalize():
        pooled = acc_ref[...] * inv_s             # (tile_n, C)
        # Dropout is identity at inference time (nn.Dropout in eval mode).
        # TODO(synk): training-mode dropout (random mask + 1/(1-p) scale) not implemented.
        fused = jnp.dot(pooled, w_ref[...],
                        preferred_element_type=jnp.float32)   # (tile_n, K+1)
        cls_out_ref[...] = fused[:, :num_classes] + b_cls_ref[...]
        reg_out_ref[...] = fused[:, num_classes:] + coral_bias_ref[...]


def apn_head_forward(x, w_cls, b_cls, w_coral, coral_bias,
                     *, tile_n=None, tile_s=None):
    """x: (N, C, T, H, W) float32/bfloat16.

    Returns (cls_score (N, num_classes) f32, reg_score (N, num_stages) f32).
    """
    n, c, t, h, w = x.shape
    s = t * h * w
    num_classes = w_cls.shape[1]
    num_stages = coral_bias.shape[1]

    # Layout glue in plain JAX: (N, C, T, H, W) -> (N, S, C) so C is on lanes.
    x_nsc = jnp.transpose(x.reshape(n, c, s), (0, 2, 1))

    # Fuse the two head matmuls into a single (C, K+1) MXU pass.
    w_fused = jnp.concatenate(
        [w_cls.astype(jnp.float32), w_coral.astype(jnp.float32)], axis=1)
    b_cls = b_cls.astype(jnp.float32)
    coral_bias = coral_bias.astype(jnp.float32)

    # --- tile sizing ----------------------------------------------------------
    if tile_n is None:
        tile_n = n if n <= 8 else 8
    tile_n = min(tile_n, n)

    itemsize = jnp.dtype(x.dtype).itemsize
    if tile_s is None:
        # ~2 MiB per x block (Pallas double-buffers each input), sized so it is
        # safe even on v7x's 64 MiB physical / 32 MiB scoped VMEM.
        target_bytes = 2 * 1024 * 1024
        cand = max(1, target_bytes // max(1, tile_n * c * itemsize))
        if cand >= s:
            tile_s = s
        else:
            tile_s = max(8, (min(cand, s) // 8) * 8)
    tile_s = min(tile_s, s)
    if tile_s != s:
        # (8,128) rule: a non-full second-to-last block dim must be 8-aligned.
        tile_s = max(8, (tile_s // 8) * 8)

    grid = (pl.cdiv(n, tile_n), pl.cdiv(s, tile_s))
    mask_tail = (s % tile_s) != 0

    kernel = functools.partial(
        apn_head_kernel,
        inv_s=1.0 / float(s), s_total=s, tile_s=tile_s,
        num_classes=num_classes, mask_tail=mask_tail)

    cls_score, reg_score = pl.pallas_call(
        kernel,
        out_shape=(
            jax.ShapeDtypeStruct((n, num_classes), jnp.float32),
            jax.ShapeDtypeStruct((n, num_stages), jnp.float32),
        ),
        grid_spec=pltpu.PrefetchScalarGridSpec(
            num_scalar_prefetch=0,
            grid=grid,
            in_specs=[
                # x streamed over (N tiles, S tiles); C stays whole on lanes.
                pl.BlockSpec((tile_n, tile_s, c), lambda i, si: (i, si, 0)),
                # Small weights / biases: VMEM resident (constant block index,
                # so they are not re-fetched across grid steps).
                pl.BlockSpec((c, num_classes + 1), lambda i, si: (0, 0)),
                pl.BlockSpec((1, num_classes), lambda i, si: (0, 0)),
                pl.BlockSpec((1, num_stages), lambda i, si: (0, 0)),
            ],
            out_specs=(
                pl.BlockSpec((tile_n, num_classes), lambda i, si: (i, 0)),
                pl.BlockSpec((tile_n, num_stages), lambda i, si: (i, 0)),
            ),
            scratch_shapes=[pltpu.VMEM((tile_n, c), jnp.float32)],
        ),
        compiler_params=pltpu.CompilerParams(
            dimension_semantics=("parallel", "arbitrary")),
    )(x_nsc, w_fused, b_cls, coral_bias)
    return cls_score, reg_score


if __name__ == "__main__":
    # Small, deterministic configuration consistent with the module.
    N, C = 2, 32                 # batch, in_channels
    T, H, W = 4, 7, 7            # temporal / spatial dims -> S = 196 (ragged tail)
    NUM_CLASSES = 16
    NUM_STAGES = 8
    INIT_STD = 0.01

    key = jax.random.PRNGKey(0)
    kx, kw_cls, kw_coral = jax.random.split(key, 3)

    x = jax.random.normal(kx, (N, C, T, H, W), dtype=jnp.float32)

    # normal_init(std=0.01) for fc weights, bias = 0; coral_bias = 0.
    w_cls = INIT_STD * jax.random.normal(kw_cls, (C, NUM_CLASSES), dtype=jnp.float32)
    b_cls = jnp.zeros((1, NUM_CLASSES), dtype=jnp.float32)
    w_coral = INIT_STD * jax.random.normal(kw_coral, (C, 1), dtype=jnp.float32)
    coral_bias = jnp.zeros((1, NUM_STAGES), dtype=jnp.float32)

    # Force multiple S tiles (tile_s=64, S=196) to exercise the accumulator
    # and the masked tail block.
    cls_score, reg_score = apn_head_forward(
        x, w_cls, b_cls, w_coral, coral_bias, tile_s=64)
    jax.block_until_ready((cls_score, reg_score))

    # Pure-JAX reference check.
    pooled_ref = jnp.mean(x.reshape(N, C, -1), axis=-1)
    cls_ref = pooled_ref @ w_cls + b_cls
    reg_ref = pooled_ref @ w_coral + coral_bias

    assert cls_score.shape == (N, NUM_CLASSES)
    assert reg_score.shape == (N, NUM_STAGES)
    assert jnp.allclose(cls_score, cls_ref, atol=1e-5, rtol=1e-5)
    assert jnp.allclose(reg_score, reg_ref, atol=1e-5, rtol=1e-5)

    # bf16 input path (halves HBM traffic; pool still accumulates in f32).
    x_bf16 = x.astype(jnp.bfloat16)
    cls_bf, reg_bf = apn_head_forward(
        x_bf16, w_cls, b_cls, w_coral, coral_bias, tile_s=64)
    jax.block_until_ready((cls_bf, reg_bf))
    pooled_bf_ref = jnp.mean(x_bf16.astype(jnp.float32).reshape(N, C, -1), axis=-1)
    cls_bf_ref = pooled_bf_ref @ w_cls + b_cls
    reg_bf_ref = pooled_bf_ref @ w_coral + coral_bias
    assert jnp.allclose(cls_bf, cls_bf_ref, atol=1e-3, rtol=1e-3)
    assert jnp.allclose(reg_bf, reg_bf_ref, atol=1e-3, rtol=1e-3)

    print("KERNEL_OK")
</pallas_src>

<mosaic_0001>
module attributes {stable_mosaic.version = 11 : i64} {
  func.func @apn_head_kernel(%arg0: i32, %arg1: i32, %arg2: memref<2x64x32xf32, #tpu.memory_space<vmem>>, %arg3: memref<32x17xf32, #tpu.memory_space<vmem>>, %arg4: memref<1x16xf32, #tpu.memory_space<vmem>>, %arg5: memref<1x8xf32, #tpu.memory_space<vmem>>, %arg6: memref<2x16xf32, #tpu.memory_space<vmem>>, %arg7: memref<2x8xf32, #tpu.memory_space<vmem>>, %arg8: memref<2x32xf32, #tpu.memory_space<vmem>>) attributes {dimension_semantics = [#tpu.dimension_semantics<parallel>, #tpu.dimension_semantics<arbitrary>], iteration_bounds = array<i64: 1, 4>, scalar_prefetch = 0 : i64, scratch_operands = 1 : i64, tpu.core_type = #tpu.core_type<tc>, window_params = [{transform_indices = @transform_0, window_bounds = array<i64: 2, 64, 32>}, {pipeline_mode = #tpu.pipeline_mode<synchronous>, transform_indices = @transform_1, window_bounds = array<i64: 32, 17>}, {pipeline_mode = #tpu.pipeline_mode<synchronous>, transform_indices = @transform_2, window_bounds = array<i64: 1, 16>}, {pipeline_mode = #tpu.pipeline_mode<synchronous>, transform_indices = @transform_3, window_bounds = array<i64: 1, 8>}, {transform_indices = @transform_4, window_bounds = array<i64: 2, 16>}, {transform_indices = @transform_5, window_bounds = array<i64: 2, 8>}]} {
    %c0_i32 = arith.constant 0 : i32
    %0 = arith.cmpi eq, %arg1, %c0_i32 : i32
    %1 = arith.extui %0 : i1 to i32
    %c0_i32_0 = arith.constant 0 : i32
    %2 = arith.cmpi ne, %1, %c0_i32_0 : i32
    scf.if %2 {
      %cst_9 = arith.constant 0.000000e+00 : f32
      %19 = vector.broadcast %cst_9 : f32 to vector<2x32xf32>
      %c0_10 = arith.constant 0 : index
      %c0_11 = arith.constant 0 : index
      %20 = vector.load %arg8[%c0_10, %c0_11] : memref<2x32xf32, #tpu.memory_space<vmem>>, vector<2x32xf32>
      tpu.vector_store %arg8[%c0_10, %c0_11], %19 {strides = array<i32>} : memref<2x32xf32, #tpu.memory_space<vmem>>, vector<2x32xf32>,
    } else {
    }
    %c0 = arith.constant 0 : index
    %c0_1 = arith.constant 0 : index
    %c0_2 = arith.constant 0 : index
    %3 = vector.load %arg2[%c0, %c0_1, %c0_2] : memref<2x64x32xf32, #tpu.memory_space<vmem>>, vector<2x64x32xf32>
    %c64_i32 = arith.constant 64 : i32
    %4 = arith.muli %arg1, %c64_i32 : i32
    %5 = tpu.iota {dimensions = array<i32: 1>} : vector<2x64x32xi32>
    %6 = vector.broadcast %4 : i32 to vector<2x64x32xi32>
    %7 = arith.addi %6, %5 : vector<2x64x32xi32>
    %c196_i32 = arith.constant 196 : i32
    %8 = vector.broadcast %c196_i32 : i32 to vector<2x64x32xi32>
    %9 = arith.cmpi slt, %7, %8 : vector<2x64x32xi32>
    %cst = arith.constant 0.000000e+00 : f32
    %10 = vector.broadcast %cst : f32 to vector<2x64x32xf32>
    %11 = arith.select %9, %3, %10 : vector<2x64x32xi1>, vector<2x64x32xf32>
    %c0_3 = arith.constant 0 : index
    %c0_4 = arith.constant 0 : index
    %12 = vector.load %arg8[%c0_3, %c0_4] : memref<2x32xf32, #tpu.memory_space<vmem>>, vector<2x32xf32>
    %cst_5 = arith.constant dense<0.000000e+00> : vector<2x32xf32>
    %13 = vector.multi_reduction <add>, %11, %cst_5 [1] : vector<2x64x32xf32> to vector<2x32xf32>
    %14 = arith.addf %12, %13 : vector<2x32xf32>
    %c0_6 = arith.constant 0 : index
    %c0_7 = arith.constant 0 : index
    %15 = vector.load %arg8[%c0_6, %c0_7] : memref<2x32xf32, #tpu.memory_space<vmem>>, vector<2x32xf32>
    tpu.vector_store %arg8[%c0_6, %c0_7], %14 {strides = array<i32>} : memref<2x32xf32, #tpu.memory_space<vmem>>, vector<2x32xf32>,
    %c3_i32 = arith.constant 3 : i32
    %16 = arith.cmpi eq, %arg1, %c3_i32 : i32
    %17 = arith.extui %16 : i1 to i32
    %c0_i32_8 = arith.constant 0 : i32
    %18 = arith.cmpi ne, %17, %c0_i32_8 : i32
    scf.if %18 {
      %c0_9 = arith.constant 0 : index
      %c0_10 = arith.constant 0 : index
      %19 = vector.load %arg8[%c0_9, %c0_10] : memref<2x32xf32, #tpu.memory_space<vmem>>, vector<2x32xf32>
      %cst_11 = arith.constant 0.00510204071 : f32
      %20 = vector.broadcast %cst_11 : f32 to vector<2x32xf32>
      %21 = arith.mulf %19, %20 : vector<2x32xf32>
      %c0_12 = arith.constant 0 : index
      %c0_13 = arith.constant 0 : index
      %22 = vector.load %arg3[%c0_12, %c0_13] : memref<32x17xf32, #tpu.memory_space<vmem>>, vector<32x17xf32>
      %cst_14 = arith.constant dense<0.000000e+00> : vector<2x17xf32>
      %23 = tpu.matmul %21, %22, %cst_14 {dimension_numbers = #tpu.dot_dimension_numbers<[1], [0], [0], [1], [0, 0, 1, 1], [], []>} : vector<2x32xf32>, vector<32x17xf32>, vector<2x17xf32> -> vector<2x17xf32>
      %24 = vector.extract_strided_slice %23 {offsets = [0, 0], sizes = [2, 16], strides = [1, 1]} : vector<2x17xf32> to vector<2x16xf32>
      %c0_15 = arith.constant 0 : index
      %c0_16 = arith.constant 0 : index
      %25 = vector.load %arg4[%c0_15, %c0_16] : memref<1x16xf32, #tpu.memory_space<vmem>>, vector<1x16xf32>
      %26 = vector.broadcast %25 : vector<1x16xf32> to vector<2x16xf32>
      %27 = arith.addf %24, %26 : vector<2x16xf32>
      %c0_17 = arith.constant 0 : index
      %c0_18 = arith.constant 0 : index
      %28 = vector.load %arg6[%c0_17, %c0_18] : memref<2x16xf32, #tpu.memory_space<vmem>>, vector<2x16xf32>
      tpu.vector_store %arg6[%c0_17, %c0_18], %27 {strides = array<i32>} : memref<2x16xf32, #tpu.memory_space<vmem>>, vector<2x16xf32>,
      %29 = vector.extract_strided_slice %23 {offsets = [0, 16], sizes = [2, 1], strides = [1, 1]} : vector<2x17xf32> to vector<2x1xf32>
      %c0_19 = arith.constant 0 : index
      %c0_20 = arith.constant 0 : index
      %30 = vector.load %arg5[%c0_19, %c0_20] : memref<1x8xf32, #tpu.memory_space<vmem>>, vector<1x8xf32>
      %31 = vector.broadcast %29 : vector<2x1xf32> to vector<2x8xf32>
      %32 = vector.broadcast %30 : vector<1x8xf32> to vector<2x8xf32>
      %33 = arith.addf %31, %32 : vector<2x8xf32>
      %c0_21 = arith.constant 0 : index
      %c0_22 = arith.constant 0 : index
      %34 = vector.load %arg7[%c0_21, %c0_22] : memref<2x8xf32, #tpu.memory_space<vmem>>, vector<2x8xf32>
      tpu.vector_store %arg7[%c0_21, %c0_22], %33 {strides = array<i32>} : memref<2x8xf32, #tpu.memory_space<vmem>>, vector<2x8xf32>,
    } else {
    }
    return
  }
  func.func @transform_0(%arg0: i32, %arg1: i32) -> (i32, i32, i32) {
    %c0_i32 = arith.constant 0 : i32
    %c0_i32_0 = arith.constant 0 : i32
    return %arg0, %arg1, %c0_i32 : i32, i32, i32
  }
  func.func @transform_1(%arg0: i32, %arg1: i32) -> (i32, i32) {
    %c0_i32 = arith.constant 0 : i32
    %c0_i32_0 = arith.constant 0 : i32
    %c0_i32_1 = arith.constant 0 : i32
    return %c0_i32, %c0_i32_0 : i32, i32
  }
  func.func @transform_2(%arg0: i32, %arg1: i32) -> (i32, i32) {
    %c0_i32 = arith.constant 0 : i32
    %c0_i32_0 = arith.constant 0 : i32
    %c0_i32_1 = arith.constant 0 : i32
    return %c0_i32, %c0_i32_0 : i32, i32
  }
  func.func @transform_3(%arg0: i32, %arg1: i32) -> (i32, i32) {
    %c0_i32 = arith.constant 0 : i32
    %c0_i32_0 = arith.constant 0 : i32
    %c0_i32_1 = arith.constant 0 : i32
    return %c0_i32, %c0_i32_0 : i32, i32
  }
  func.func @transform_4(%arg0: i32, %arg1: i32) -> (i32, i32) {
    %c0_i32 = arith.constant 0 : i32
    %c0_i32_0 = arith.constant 0 : i32
    return %arg0, %c0_i32 : i32, i32
  }
  func.func @transform_5(%arg0: i32, %arg1: i32) -> (i32, i32) {
    %c0_i32 = arith.constant 0 : i32
    %c0_i32_0 = arith.constant 0 : i32
    return %arg0, %c0_i32 : i32, i32
  }
}

</mosaic_0001>

<llo_original>
// kernel: tpu_custom_call.1
$region0: #{tpu_custom_call.1}
  #allocation0 [shape = 'u32[]', space=smem, size = 0x4, offset = 0x4, fixed_abs, tag = 'smem constant byte address 0x4 - core index']
  #allocation1 [shape = 'u32[144,128]{1,0:T(1,128)}', space=vmem, size = 0x12000, scoped, tag = 'internal scratch']
  #allocation2 [shape = 'f32[2,32]{1,0:T(2,128)}', space=vmem, size = 0x400, scoped, tag = 'scratch operand']
  %s0 = inlined_call_operand.vmem [shape: f32[2,196,32], index: 0, kind: input, shape index: {}]
  %s1 = inlined_call_operand.vmem [shape: f32[32,17], index: 1, kind: input, shape index: {}]
  %s2 = inlined_call_operand.vmem [shape: f32[1,16], index: 2, kind: input, shape index: {}]
  %s3 = inlined_call_operand.vmem [shape: f32[1,8], index: 3, kind: input, shape index: {}]
  %s4 = inlined_call_operand.hbm [shape: f32[2,16], index: 4, kind: output, shape index: {0}]
  %s5 = inlined_call_operand.hbm [shape: f32[2,8], index: 5, kind: output, shape index: {1}]
  %6 = xla_tuple %s4, %s5
  %s7 = sld [smem:[#allocation0]]
  $region117: #{tpu_custom_call.1} parent=0
    _
  %s9 = ssub.s32 1, %s7
  %s10 = scalar_select 0, %s9, %s7
  $region1: #{tpu_custom_call.1} parent=0
    #allocation3 [shape = 'u8[131072]{0}', space=vmem, size = 0x20000, scoped, tag = 'input window, operand 0']
    #allocation4 [shape = 'u8[1024]{0}', space=vmem, size = 0x400, scoped, tag = 'output window, operand 0, single buffered']
    #allocation5 [shape = 's32[2]{0}', space=sflag, size = 0x8, scoped, tag = 'scoped memory for tpu_custom_call.1']
    #allocation6 [shape = 'u8[1024]{0}', space=vmem, size = 0x400, scoped, tag = 'output window, operand 1, single buffered']
    #allocation7 [shape = 's32[1]{0}', space=sflag, size = 0x4, scoped, tag = 'scoped memory for tpu_custom_call.1']
    %11 = vsyncpa [#allocation5], 0
    %12 = vsyncpa [#allocation7], 0
    loop: start=0, step=1, limit=6
    $region2: #{tpu_custom_call.1} parent=1 // loop_pre_header
      _
    $region3: #{tpu_custom_call.1} parent=1 // loop_header
      %s14 = sphi 0, %s18
      %p15 = scmp.ge.s32.totalorder %s14, 6
      %s21 = sphi 0, %s33
      %s22 = sphi 0, %s29
      %s23 = sphi 0, %s21
      %s24 = sphi 0, %s22
      %s25 = sphi 0, %s23
      %s26 = sphi 0, %s24
      %s38 = sphi 0, %s40
      %s41 = sphi 0, %s38
      %s42 = sphi 0, %s41
      %s58 = sphi 0, %s42
      %s62 = sphi 0, %s62
      %s64 = sphi 0, %s62
      %s65 = sphi 0, %s64
      %s79 = sphi 0, %s65
      %s83 = sphi 0, %s83
      %s85 = sphi 0, %s83
      %s86 = sphi 0, %s85
      %s100 = sphi 0, %s86
      %s104 = sphi 0, %s104
      %s106 = sphi 0, %s104
      %s107 = sphi 0, %s106
      %s121 = sphi 0, %s107
      %s127 = sphi 0, %s129
      %s130 = sphi 0, %s127
      %s131 = sphi 0, %s130
      %s147 = sphi 0, %s131
      %s153 = sphi 0, %s155
      %s156 = sphi 0, %s153
      %s157 = sphi 0, %s156
      %s173 = sphi 0, %s157
    $region4: #{tpu_custom_call.1} parent=1 // loop_header_branch
      %17 = sbr.rel (%p15) target = $region8
    $region5: #{tpu_custom_call.1} parent=1 // loop_body
      %s19 = ssub.s32 %s14, 1
      %s20 = ssub.s32 %s14, 2
      %s27 = sadd.s32 1, %s22
      %p28 = scmp.ge.s32.totalorder %s27, 4
      %s29 = scalar_select %p28, 0, %s27
      %s30 = sadd.s32 1, %s21
      %s31 = scalar_select %p28, %s30, %s21
      %p32 = scmp.ge.s32.totalorder %s31, 1
      %s33 = scalar_select %p32, 0, %s31
      %s34 = ssub.s32 %s21, %s33
      %s35 = ssub.s32 %s22, %s29
      %s36 = sor.u32 %s34, %s35
      %p37 = scmp.eq.s32.totalorder %s36, 0
      %s39 = sadd.s32 %s38, 1
      %s40 = scalar_select %p37, %s38, %s39
      %p43 = pneg %p37
      %p44 = scmp.eq.s32.totalorder %s14, 3
      %p45 = por %p43, %p44
      %p46 = scmp.ne.s32.totalorder %s38, %s41
      %p47 = scmp.eq.s32.totalorder %s14, 0
      %p48 = por %p46, %p47
      %p49 = scmp.ne.s32.totalorder %s38, %s41
      %p50 = scmp.eq.s32.totalorder %s19, 3
      %p51 = por %p49, %p50
      %p52 = scmp.ne.s32.totalorder %s41, %s42
      %p53 = scmp.eq.s32.totalorder %s19, 0
      %p54 = por %p52, %p53
      %p55 = scmp.ne.s32.totalorder %s41, %s42
      %p56 = scmp.eq.s32.totalorder %s20, 3
      %p57 = por %p55, %p56
      %p59 = scmp.ne.s32.totalorder %s42, %s58
      %p60 = scmp.eq.s32.totalorder %s20, 0
      %p61 = por %p59, %p60
      %s63 = sadd.s32 %s62, 1
      %p66 = scmp.eq.s32.totalorder %s14, 3
      %p67 = scmp.ne.s32.totalorder %s62, %s64
      %p68 = scmp.eq.s32.totalorder %s14, 0
      %p69 = por %p67, %p68
      %p70 = scmp.ne.s32.totalorder %s62, %s64
      %p71 = scmp.eq.s32.totalorder %s19, 3
      %p72 = por %p70, %p71
      %p73 = scmp.ne.s32.totalorder %s64, %s65
      %p74 = scmp.eq.s32.totalorder %s19, 0
      %p75 = por %p73, %p74
      %p76 = scmp.ne.s32.totalorder %s64, %s65
      %p77 = scmp.eq.s32.totalorder %s20, 3
      %p78 = por %p76, %p77
      %p80 = scmp.ne.s32.totalorder %s65, %s79
      %p81 = scmp.eq.s32.totalorder %s20, 0
      %p82 = por %p80, %p81
      %s84 = sadd.s32 %s83, 1
      %p87 = scmp.eq.s32.totalorder %s14, 3
      %p88 = scmp.ne.s32.totalorder %s83, %s85
      %p89 = scmp.eq.s32.totalorder %s14, 0
      %p90 = por %p88, %p89
      %p91 = scmp.ne.s32.totalorder %s83, %s85
      %p92 = scmp.eq.s32.totalorder %s19, 3
      %p93 = por %p91, %p92
      %p94 = scmp.ne.s32.totalorder %s85, %s86
      %p95 = scmp.eq.s32.totalorder %s19, 0
      %p96 = por %p94, %p95
      %p97 = scmp.ne.s32.totalorder %s85, %s86
      %p98 = scmp.eq.s32.totalorder %s20, 3
      %p99 = por %p97, %p98
      %p101 = scmp.ne.s32.totalorder %s86, %s100
      %p102 = scmp.eq.s32.totalorder %s20, 0
      %p103 = por %p101, %p102
      %s105 = sadd.s32 %s104, 1
      %p108 = scmp.eq.s32.totalorder %s14, 3
      %p109 = scmp.ne.s32.totalorder %s104, %s106
      %p110 = scmp.eq.s32.totalorder %s14, 0
      %p111 = por %p109, %p110
      %p112 = scmp.ne.s32.totalorder %s104, %s106
      %p113 = scmp.eq.s32.totalorder %s19, 3
      %p114 = por %p112, %p113
      %p115 = scmp.ne.s32.totalorder %s106, %s107
      %p116 = scmp.eq.s32.totalorder %s19, 0
      %p117 = por %p115, %p116
      %p118 = scmp.ne.s32.totalorder %s106, %s107
      %p119 = scmp.eq.s32.totalorder %s20, 3
      %p120 = por %p118, %p119
      %p122 = scmp.ne.s32.totalorder %s107, %s121
      %p123 = scmp.eq.s32.totalorder %s20, 0
      %p124 = por %p122, %p123
      %s125 = ssub.s32 %s21, %s33
      %p126 = scmp.eq.s32.totalorder %s125, 0
      %s128 = sadd.s32 %s127, 1
      %s129 = scalar_select %p126, %s127, %s128
      %p132 = pneg %p126
      %p133 = scmp.eq.s32.totalorder %s14, 3
      %p134 = por %p132, %p133
      %p135 = scmp.ne.s32.totalorder %s127, %s130
      %p136 = scmp.eq.s32.totalorder %s14, 0
      %p137 = por %p135, %p136
      %p138 = scmp.ne.s32.totalorder %s127, %s130
      %p139 = scmp.eq.s32.totalorder %s19, 3
      %p140 = por %p138, %p139
      %p141 = scmp.ne.s32.totalorder %s130, %s131
      %p142 = scmp.eq.s32.totalorder %s19, 0
      %p143 = por %p141, %p142
      %p144 = scmp.ne.s32.totalorder %s130, %s131
      %p145 = scmp.eq.s32.totalorder %s20, 3
      %p146 = por %p144, %p145
      %p148 = scmp.ne.s32.totalorder %s131, %s147
      %p149 = scmp.eq.s32.totalorder %s20, 0
      %p150 = por %p148, %p149
      %s151 = ssub.s32 %s21, %s33
      %p152 = scmp.eq.s32.totalorder %s151, 0
      %s154 = sadd.s32 %s153, 1
      %s155 = scalar_select %p152, %s153, %s154
      %p158 = pneg %p152
      %p159 = scmp.eq.s32.totalorder %s14, 3
      %p160 = por %p158, %p159
      %p161 = scmp.ne.s32.totalorder %s153, %s156
      %p162 = scmp.eq.s32.totalorder %s14, 0
      %p163 = por %p161, %p162
      %p164 = scmp.ne.s32.totalorder %s153, %s156
      %p165 = scmp.eq.s32.totalorder %s19, 3
      %p166 = por %p164, %p165
      %p167 = scmp.ne.s32.totalorder %s156, %s157
      %p168 = scmp.eq.s32.totalorder %s19, 0
      %p169 = por %p167, %p168
      %p170 = scmp.ne.s32.totalorder %s156, %s157
      %p171 = scmp.eq.s32.totalorder %s20, 3
      %p172 = por %p170, %p171
      %p174 = scmp.ne.s32.totalorder %s157, %s173
      %p175 = scmp.eq.s32.totalorder %s20, 0
      %p176 = por %p174, %p175
      %p177 = scmp.le.s32.totalorder 1, %s14
      %p178 = scmp.lt.s32.totalorder %s14, 5
      %p179 = pnand %p177, %p178
      %p180 = pneg %p179
      // Predicated region
      $region9: #{tpu_custom_call.1} parent=5 // pred_check
        _
      $region10: #{tpu_custom_call.1} parent=5 // pred_check_branch
        %182 = sbr.rel (%p179) target = $region12
      $region11: #{tpu_custom_call.1} parent=5 // pred_region
        %s183 = ssub.s32 %s14, 1
        // Predicated region
        $region13: #{tpu_custom_call.1} parent=11 // pred_check
          %p184 = pneg %p75
        $region14: #{tpu_custom_call.1} parent=11 // pred_check_branch
          %186 = sbr.rel (%p184) target = $region16
        $region15: #{tpu_custom_call.1} parent=11 // pred_region
          _
        $region16: #{tpu_custom_call.1} parent=11 // pred_fallthru
          _
        // Predicated region
        $region17: #{tpu_custom_call.1} parent=11 // pred_check
          %p187 = pneg %p96
        $region18: #{tpu_custom_call.1} parent=11 // pred_check_branch
          %189 = sbr.rel (%p187) target = $region20
        $region19: #{tpu_custom_call.1} parent=11 // pred_region
          _
        $region20: #{tpu_custom_call.1} parent=11 // pred_fallthru
          _
        // Predicated region
        $region21: #{tpu_custom_call.1} parent=11 // pred_check
          %p190 = pneg %p117
        $region22: #{tpu_custom_call.1} parent=11 // pred_check_branch
          %192 = sbr.rel (%p190) target = $region24
        $region23: #{tpu_custom_call.1} parent=11 // pred_region
          _
        $region24: #{tpu_custom_call.1} parent=11 // pred_fallthru
          _
      $region12: #{tpu_custom_call.1} parent=5 // pred_fallthru
        _
      %p193 = scmp.lt.s32.totalorder %s14, 4
      // Predicated region
      $region25: #{tpu_custom_call.1} parent=5 // pred_check
        %p194 = pneg %p193
      $region26: #{tpu_custom_call.1} parent=5 // pred_check_branch
        %196 = sbr.rel (%p194) target = $region28
      $region27: #{tpu_custom_call.1} parent=5 // pred_region
        // Predicated region
        $region29: #{tpu_custom_call.1} parent=27 // pred_check
          %p197 = pneg %p48
        $region30: #{tpu_custom_call.1} parent=27 // pred_check_branch
          %199 = sbr.rel (%p197) target = $region32
        $region31: #{tpu_custom_call.1} parent=27 // pred_region
          %s200 = sand.u32 %s38, 1
          %s201 = sand.u32 %s38, 1
          %s202 = smul.addr %s201, 128
          %s203 = scalar_lea.vmem [#allocation3], %s202
          %s204 = smul.u32 2, %s21
          %s205 = smul.u32 8, %s22
          %s206 = ssub.s32 25, %s205
          %p207 = scmp.lt.s32.totalorder %s206, 8
          %s208 = scalar_select %p207, %s206, 8
          %s209 = smul.u32 256, %s208
          %p210 = scmp.ne.s32.totalorder 0, %s209
          %s211 = smul.addr %s204, 25
          %s212 = sadd.s32 %s205, %s211
          %s213 = smul.addr %s212, 8
          %s214 = scalar_lea.vmem %s0, %s213
          // Predicated region
          $region33: #{tpu_custom_call.1} parent=31 // pred_check
            %p215 = pneg %p210
          $region34: #{tpu_custom_call.1} parent=31 // pred_check_branch
            %217 = sbr.rel (%p215) target = $region36
          $region35: #{tpu_custom_call.1} parent=31 // pred_region
            // Predicated region
            $region37: #{tpu_custom_call.1} parent=35 // pred_check
              _
            $region38: #{tpu_custom_call.1} parent=35 // pred_check_branch
              %219 = sbr.rel (0) target = $region40
            $region39: #{tpu_custom_call.1} parent=35 // pred_region
              // Predicated region
              $region59: #{tpu_custom_call.1} parent=39 // pred_check
                _
              $region60: #{tpu_custom_call.1} parent=39 // pred_check_branch
                %301 = sbr.rel (0) target = $region62
              $region61: #{tpu_custom_call.1} parent=39 // pred_region
                %s302 = sshrl.u32 %s208, 3
                // While loop
                $region63: #{tpu_custom_call.1} parent=61 // loop_pre_header
                  _
                $region64: #{tpu_custom_call.1} parent=61 // loop_header
                  %s304 = sphi 0, %s306
                  %p305 = scmp.ge.s32.totalorder %s304, %s302
                  %s309 = sphi 0, %s346
                  %s310 = sphi %s214, %s349
                  %s311 = sphi %s203, %s350
                $region65: #{tpu_custom_call.1} parent=61 // loop_header_branch
                  %308 = sbr.rel (%p305) target = $region69
                $region66: #{tpu_custom_call.1} parent=61 // loop_body
                  %v312 = vld [vmem:[%s310] sm:$0xff]
                  %313 = vst [vmem:[%s311] sm:$0xff] %v312
                  %v314 = vld [vmem:[%s310 + $0x8] sm:$0xff]
                  %315 = vst [vmem:[%s311 + $0x8] sm:$0xff] %v314
                  %v316 = vld [vmem:[%s310 + $0x10] sm:$0xff]
                  %317 = vst [vmem:[%s311 + $0x10] sm:$0xff] %v316
                  %v318 = vld [vmem:[%s310 + $0x18] sm:$0xff]
                  %319 = vst [vmem:[%s311 + $0x18] sm:$0xff] %v318
                  %v320 = vld [vmem:[%s310 + $0x20] sm:$0xff]
                  %321 = vst [vmem:[%s311 + $0x20] sm:$0xff] %v320
                  %v322 = vld [vmem:[%s310 + $0x28] sm:$0xff]
                  %323 = vst [vmem:[%s311 + $0x28] sm:$0xff] %v322
                  %v324 = vld [vmem:[%s310 + $0x30] sm:$0xff]
                  %325 = vst [vmem:[%s311 + $0x30] sm:$0xff] %v324
                  %v326 = vld [vmem:[%s310 + $0x38] sm:$0xff]
                  %327 = vst [vmem:[%s311 + $0x38] sm:$0xff] %v326
                  %v328 = vld [vmem:[%s310 + $0xc8] sm:$0xff]
                  %329 = vst [vmem:[%s311 + $0x40] sm:$0xff] %v328
                  %v330 = vld [vmem:[%s310 + $0xd0] sm:$0xff]
                  %331 = vst [vmem:[%s311 + $0x48] sm:$0xff] %v330
                  %v332 = vld [vmem:[%s310 + $0xd8] sm:$0xff]
                  %333 = vst [vmem:[%s311 + $0x50] sm:$0xff] %v332
                  %v334 = vld [vmem:[%s310 + $0xe0] sm:$0xff]
                  %335 = vst [vmem:[%s311 + $0x58] sm:$0xff] %v334
                  %v336 = vld [vmem:[%s310 + $0xe8] sm:$0xff]
                  %337 = vst [vmem:[%s311 + $0x60] sm:$0xff] %v336
                  %v338 = vld [vmem:[%s310 + $0xf0] sm:$0xff]
                  %339 = vst [vmem:[%s311 + $0x68] sm:$0xff] %v338
                  %v340 = vld [vmem:[%s310 + $0xf8] sm:$0xff]
                  %341 = vst [vmem:[%s311 + $0x70] sm:$0xff] %v340
                  %v342 = vld [vmem:[%s310 + $0x100] sm:$0xff]
                  %343 = vst [vmem:[%s311 + $0x78] sm:$0xff] %v342
                  %s344 = sadd.s32 1, %s309
                  %p345 = scmp.ge.s32.totalorder %s344, %s302
                  %s346 = scalar_select %p345, 0, %s344
                  %s347 = smul.u32 %s346, 64
                  %s348 = smul.u32 %s346, 64
                  %s349 = scalar_lea.vmem %s214, %s347
                  %s350 = scalar_lea.vmem %s203, %s348 [#allocation3]
                $region67: #{tpu_custom_call.1} parent=61 // loop_footer
                  %s306 = sadd.s32 %s304, 1
                $region68: #{tpu_custom_call.1} parent=61 // loop_footer_branch
                  %303 = sbr.rel target = $region64
                $region69: #{tpu_custom_call.1} parent=61 // loop_exit
                  _
                %s351 = sshrl.u32 %s208, 3
                %s352 = sand.u32 %s208, 7
                %s353 = smul.u32 %s351, 8
                %s354 = smul.u32 8, %s353
                %s355 = scalar_lea.vmem %s214, %s354
                %s356 = smul.u32 8, %s353
                %s357 = scalar_lea.vmem %s203, %s356 [#allocation3]
                // While loop
                $region70: #{tpu_custom_call.1} parent=61 // loop_pre_header
                  _
                $region71: #{tpu_custom_call.1} parent=61 // loop_header
                  %s359 = sphi 0, %s361
                  %p360 = scmp.ge.s32.totalorder %s359, %s352
                  %s364 = sphi 0, %s373
                  %s365 = sphi %s355, %s376
                  %s366 = sphi %s357, %s377
                $region72: #{tpu_custom_call.1} parent=61 // loop_header_branch
                  %363 = sbr.rel (%p360) target = $region76
                $region73: #{tpu_custom_call.1} parent=61 // loop_body
                  %v367 = vld [vmem:[%s365] sm:$0xff]
                  %368 = vst [vmem:[%s366] sm:$0xff] %v367
                  %v369 = vld [vmem:[%s365 + $0xc8] sm:$0xff]
                  %370 = vst [vmem:[%s366 + $0x40] sm:$0xff] %v369
                  %s371 = sadd.s32 1, %s364
                  %p372 = scmp.ge.s32.totalorder %s371, %s352
                  %s373 = scalar_select %p372, 0, %s371
                  %s374 = smul.u32 %s373, 8
                  %s375 = smul.u32 %s373, 8
                  %s376 = scalar_lea.vmem %s355, %s374
                  %s377 = scalar_lea.vmem %s357, %s375 [#allocation3]
                $region74: #{tpu_custom_call.1} parent=61 // loop_footer
                  %s361 = sadd.s32 %s359, 1
                $region75: #{tpu_custom_call.1} parent=61 // loop_footer_branch
                  %358 = sbr.rel target = $region71
                $region76: #{tpu_custom_call.1} parent=61 // loop_exit
                  _
              $region62: #{tpu_custom_call.1} parent=39 // pred_fallthru
                _
              // Predicated region
              $region77: #{tpu_custom_call.1} parent=39 // pred_check
                _
              $region78: #{tpu_custom_call.1} parent=39 // pred_check_branch
                %379 = sbr.rel target = $region80
              $region79: #{tpu_custom_call.1} parent=39 // pred_region
                _
              $region80: #{tpu_custom_call.1} parent=39 // pred_fallthru
                _
            $region40: #{tpu_custom_call.1} parent=35 // pred_fallthru
              _
            // Predicated region
            $region41: #{tpu_custom_call.1} parent=35 // pred_check
              _
            $region42: #{tpu_custom_call.1} parent=35 // pred_check_branch
              %221 = sbr.rel target = $region44
            $region43: #{tpu_custom_call.1} parent=35 // pred_region
              %s223 = ssub.s32 256, 1
              %s224 = sshrl.u32 %s208, 3
              // While loop
              $region45: #{tpu_custom_call.1} parent=43 // loop_pre_header
                _
              $region46: #{tpu_custom_call.1} parent=43 // loop_header
                %s226 = sphi 0, %s228
                %p227 = scmp.ge.s32.totalorder %s226, %s224
                %s231 = sphi 0, %s268
                %s232 = sphi %s214, %s271
                %s233 = sphi %s203, %s272
              $region47: #{tpu_custom_call.1} parent=43 // loop_header_branch
                %230 = sbr.rel (%p227) target = $region51
              $region48: #{tpu_custom_call.1} parent=43 // loop_body
                %v234 = vld [vmem:[%s232] sm:%s223]
                %235 = vst [vmem:[%s233] sm:%s223] %v234
                %v236 = vld [vmem:[%s232 + $0x8] sm:%s223]
                %237 = vst [vmem:[%s233 + $0x8] sm:%s223] %v236
                %v238 = vld [vmem:[%s232 + $0x10] sm:%s223]
                %239 = vst [vmem:[%s233 + $0x10] sm:%s223] %v238
                %v240 = vld [vmem:[%s232 + $0x18] sm:%s223]
                %241 = vst [vmem:[%s233 + $0x18] sm:%s223] %v240
                %v242 = vld [vmem:[%s232 + $0x20] sm:%s223]
                %243 = vst [vmem:[%s233 + $0x20] sm:%s223] %v242
                %v244 = vld [vmem:[%s232 + $0x28] sm:%s223]
                %245 = vst [vmem:[%s233 + $0x28] sm:%s223] %v244
                %v246 = vld [vmem:[%s232 + $0x30] sm:%s223]
                %247 = vst [vmem:[%s233 + $0x30] sm:%s223] %v246
                %v248 = vld [vmem:[%s232 + $0x38] sm:%s223]
                %249 = vst [vmem:[%s233 + $0x38] sm:%s223] %v248
                %v250 = vld [vmem:[%s232 + $0xc8] sm:%s223]
                %251 = vst [vmem:[%s233 + $0x40] sm:%s223] %v250
                %v252 = vld [vmem:[%s232 + $0xd0] sm:%s223]
                %253 = vst [vmem:[%s233 + $0x48] sm:%s223] %v252
                %v254 = vld [vmem:[%s232 + $0xd8] sm:%s223]
                %255 = vst [vmem:[%s233 + $0x50] sm:%s223] %v254
                %v256 = vld [vmem:[%s232 + $0xe0] sm:%s223]
                %257 = vst [vmem:[%s233 + $0x58] sm:%s223] %v256
                %v258 = vld [vmem:[%s232 + $0xe8] sm:%s223]
                %259 = vst [vmem:[%s233 + $0x60] sm:%s223] %v258
                %v260 = vld [vmem:[%s232 + $0xf0] sm:%s223]
                %261 = vst [vmem:[%s233 + $0x68] sm:%s223] %v260
                %v262 = vld [vmem:[%s232 + $0xf8] sm:%s223]
                %263 = vst [vmem:[%s233 + $0x70] sm:%s223] %v262
                %v264 = vld [vmem:[%s232 + $0x100] sm:%s223]
                %265 = vst [vmem:[%s233 + $0x78] sm:%s223] %v264
                %s266 = sadd.s32 1, %s231
                %p267 = scmp.ge.s32.totalorder %s266, %s224
                %s268 = scalar_select %p267, 0, %s266
                %s269 = smul.u32 %s268, 64
                %s270 = smul.u32 %s268, 64
                %s271 = scalar_lea.vmem %s214, %s269
                %s272 = scalar_lea.vmem %s203, %s270 [#allocation3]
              $region49: #{tpu_custom_call.1} parent=43 // loop_footer
                %s228 = sadd.s32 %s226, 1
              $region50: #{tpu_custom_call.1} parent=43 // loop_footer_branch
                %225 = sbr.rel target = $region46
              $region51: #{tpu_custom_call.1} parent=43 // loop_exit
                _
              %s273 = sshrl.u32 %s208, 3
              %s274 = sand.u32 %s208, 7
              %s275 = smul.u32 %s273, 8
              %s276 = smul.u32 8, %s275
              %s277 = scalar_lea.vmem %s214, %s276
              %s278 = smul.u32 8, %s275
              %s279 = scalar_lea.vmem %s203, %s278 [#allocation3]
              // While loop
              $region52: #{tpu_custom_call.1} parent=43 // loop_pre_header
                _
              $region53: #{tpu_custom_call.1} parent=43 // loop_header
                %s281 = sphi 0, %s283
                %p282 = scmp.ge.s32.totalorder %s281, %s274
                %s286 = sphi 0, %s295
                %s287 = sphi %s277, %s298
                %s288 = sphi %s279, %s299
              $region54: #{tpu_custom_call.1} parent=43 // loop_header_branch
                %285 = sbr.rel (%p282) target = $region58
              $region55: #{tpu_custom_call.1} parent=43 // loop_body
                %v289 = vld [vmem:[%s287] sm:%s223]
                %290 = vst [vmem:[%s288] sm:%s223] %v289
                %v291 = vld [vmem:[%s287 + $0xc8] sm:%s223]
                %292 = vst [vmem:[%s288 + $0x40] sm:%s223] %v291
                %s293 = sadd.s32 1, %s286
                %p294 = scmp.ge.s32.totalorder %s293, %s274
                %s295 = scalar_select %p294, 0, %s293
                %s296 = smul.u32 %s295, 8
                %s297 = smul.u32 %s295, 8
                %s298 = scalar_lea.vmem %s277, %s296
                %s299 = scalar_lea.vmem %s279, %s297 [#allocation3]
              $region56: #{tpu_custom_call.1} parent=43 // loop_footer
                %s283 = sadd.s32 %s281, 1
              $region57: #{tpu_custom_call.1} parent=43 // loop_footer_branch
                %280 = sbr.rel target = $region53
              $region58: #{tpu_custom_call.1} parent=43 // loop_exit
                _
            $region44: #{tpu_custom_call.1} parent=35 // pred_fallthru
              _
          $region36: #{tpu_custom_call.1} parent=31 // pred_fallthru
            _
          %380 = vnop
        $region32: #{tpu_custom_call.1} parent=27 // pred_fallthru
          _
      $region28: #{tpu_custom_call.1} parent=5 // pred_fallthru
        _
      %p381 = scmp.le.s32.totalorder 1, %s14
      %p382 = scmp.lt.s32.totalorder %s14, 5
      %p383 = pnand %p381, %p382
      %p384 = pneg %p383
      // Predicated region
      $region81: #{tpu_custom_call.1} parent=5 // pred_check
        _
      $region82: #{tpu_custom_call.1} parent=5 // pred_check_branch
        %386 = sbr.rel (%p383) target = $region84
      $region83: #{tpu_custom_call.1} parent=5 // pred_region
        %s387 = ssub.s32 %s14, 1
        %s388 = sand.u32 %s41, 1
        %s389 = sand.u32 %s41, 1
        %s390 = smul.addr %s389, 128
        %s391 = scalar_lea.vmem [#allocation3], %s390
        // Predicated region
        $region85: #{tpu_custom_call.1} parent=83 // pred_check
          %p392 = pneg %p54
        $region86: #{tpu_custom_call.1} parent=83 // pred_check_branch
          %394 = sbr.rel (%p392) target = $region88
        $region87: #{tpu_custom_call.1} parent=83 // pred_region
          _
        $region88: #{tpu_custom_call.1} parent=83 // pred_fallthru
          _
        %s395 = sand.u32 %s41, 1
        %s396 = sand.u32 %s41, 1
        %s397 = smul.addr %s396, 128
        %s398 = scalar_lea.vmem [#allocation3], %s397
        %p399 = pneg %p54
        %p400 = pneg %p51
        %p401 = pneg %p75
        %p402 = pneg %p72
        %p403 = pneg %p96
        %p404 = pneg %p93
        %p405 = pneg %p117
        %p406 = pneg %p114
        %p407 = pneg %p143
        %p408 = pneg %p140
        %p409 = pneg %p169
        %p410 = pneg %p166
        %s411 = smul.u32 2, %s23
        %s412 = smul.u32 8, %s24
        %s413 = ssub.s32 25, %s412
        %p414 = scmp.lt.s32.totalorder %s413, 8
        %s415 = scalar_select %p414, %s413, 8
        %s416 = smul.u32 256, %s415
        %p417 = scmp.eq.s32.totalorder %s24, 0
        // Predicated region
        $region89: #{tpu_custom_call.1} parent=83 // pred_check
          %p418 = pneg %p417
        $region90: #{tpu_custom_call.1} parent=83 // pred_check_branch
          %420 = sbr.rel (%p418) target = $region92
        $region91: #{tpu_custom_call.1} parent=83 // pred_region
          %vm421 = vcmask 254976
          %422 = vst.msk [vmem:[#allocation2] sm:$0x3] %vm421, 0.0
        $region92: #{tpu_custom_call.1} parent=83 // pred_fallthru
          _
        %v423 = vld [vmem:[%s391] sm:$0xff]
        %v424 = vld [vmem:[%s391 + $0x8] sm:$0xff]
        %v425 = vld [vmem:[%s391 + $0x10] sm:$0xff]
        %v426 = vld [vmem:[%s391 + $0x18] sm:$0xff]
        %v427 = vld [vmem:[%s391 + $0x20] sm:$0xff]
        %v428 = vld [vmem:[%s391 + $0x28] sm:$0xff]
        %v429 = vld [vmem:[%s391 + $0x30] sm:$0xff]
        %v430 = vld [vmem:[%s391 + $0x38] sm:$0xff]
        %v431 = vld [vmem:[%s391 + $0x40] sm:$0xff]
        %v432 = vld [vmem:[%s391 + $0x48] sm:$0xff]
        %v433 = vld [vmem:[%s391 + $0x50] sm:$0xff]
        %v434 = vld [vmem:[%s391 + $0x58] sm:$0xff]
        %v435 = vld [vmem:[%s391 + $0x60] sm:$0xff]
        %v436 = vld [vmem:[%s391 + $0x68] sm:$0xff]
        %v437 = vld [vmem:[%s391 + $0x70] sm:$0xff]
        %v438 = vld [vmem:[%s391 + $0x78] sm:$0xff]
        %s439 = smul.u32 %s24, 64
        %v440 = vlaneseq
        %v441 = vshrl.u32 %v440, 7
        %v442 = vadd.s32 %v441, 8
        %v443 = vadd.s32 %v441, 16
        %v444 = vadd.s32 %v441, 24
        %v445 = vadd.s32 %v441, 32
        %v446 = vadd.s32 %v441, 40
        %v447 = vadd.s32 %v441, 48
        %v448 = vadd.s32 %v441, 56
        %v449 = vstv %s439
        %v450 = vadd.s32 %v449, %v441
        %v451 = vadd.s32 %v449, %v442
        %v452 = vadd.s32 %v449, %v443
        %v453 = vadd.s32 %v449, %v444
        %v454 = vadd.s32 %v449, %v445
        %v455 = vadd.s32 %v449, %v446
        %v456 = vadd.s32 %v449, %v447
        %v457 = vadd.s32 %v449, %v448
        %vm458 = vcmp.lt.s32.totalorder %v450, 196
        %vm459 = vcmp.lt.s32.totalorder %v451, 196
        %vm460 = vcmp.lt.s32.totalorder %v452, 196
        %vm461 = vcmp.lt.s32.totalorder %v453, 196
        %vm462 = vcmp.lt.s32.totalorder %v454, 196
        %vm463 = vcmp.lt.s32.totalorder %v455, 196
        %vm464 = vcmp.lt.s32.totalorder %v456, 196
        %vm465 = vcmp.lt.s32.totalorder %v457, 196
        %v466 = vsel %vm458, %v423, 0.0
        %v467 = vsel %vm459, %v424, 0.0
        %v468 = vsel %vm460, %v425, 0.0
        %v469 = vsel %vm461, %v426, 0.0
        %v470 = vsel %vm462, %v427, 0.0
        %v471 = vsel %vm463, %v428, 0.0
        %v472 = vsel %vm464, %v429, 0.0
        %v473 = vsel %vm465, %v430, 0.0
        %v474 = vsel %vm458, %v431, 0.0
        %v475 = vsel %vm459, %v432, 0.0
        %v476 = vsel %vm460, %v433, 0.0
        %v477 = vsel %vm461, %v434, 0.0
        %v478 = vsel %vm462, %v435, 0.0
        %v479 = vsel %vm463, %v436, 0.0
        %v480 = vsel %vm464, %v437, 0.0
        %v481 = vsel %vm465, %v438, 0.0
        %v482 = vld [vmem:[#allocation2] sm:$0x3]
        %vm483 = vcmask 261120
        %v484 = vsel %vm483, %v466, 0.0
        %v485 = vsel %vm483, %v467, 0.0
        %v486 = vadd.f32 %v484, %v485
        %v487 = vsel %vm483, %v468, 0.0
        %v488 = vadd.f32 %v486, %v487
        %v489 = vsel %vm483, %v469, 0.0
        %v490 = vadd.f32 %v488, %v489
        %v491 = vsel %vm483, %v470, 0.0
        %v492 = vadd.f32 %v490, %v491
        %v493 = vsel %vm483, %v471, 0.0
        %v494 = vadd.f32 %v492, %v493
        %v495 = vsel %vm483, %v472, 0.0
        %v496 = vadd.f32 %v494, %v495
        %v497 = vsel %vm483, %v473, 0.0
        %v498 = vadd.f32 %v496, %v497
        %v499 = vrot.slane %v498, 4
        %v500 = vadd.f32 %v498, %v499
        %v501 = vrot.slane %v500, 2
        %v502 = vadd.f32 %v500, %v501
        %v503 = vrot.slane %v502, 1
        %v504 = vadd.f32 %v502, %v503
        %v505 = vsel %vm483, %v474, 0.0
        %v506 = vsel %vm483, %v475, 0.0
        %v507 = vadd.f32 %v505, %v506
        %v508 = vsel %vm483, %v476, 0.0
        %v509 = vadd.f32 %v507, %v508
        %v510 = vsel %vm483, %v477, 0.0
        %v511 = vadd.f32 %v509, %v510
        %v512 = vsel %vm483, %v478, 0.0
        %v513 = vadd.f32 %v511, %v512
        %v514 = vsel %vm483, %v479, 0.0
        %v515 = vadd.f32 %v513, %v514
        %v516 = vsel %vm483, %v480, 0.0
        %v517 = vadd.f32 %v515, %v516
        %v518 = vsel %vm483, %v481, 0.0
        %v519 = vadd.f32 %v517, %v518
        %v520 = vrot.slane %v519, 4
        %v521 = vadd.f32 %v519, %v520
        %v522 = vrot.slane %v521, 2
        %v523 = vadd.f32 %v521, %v522
        %v524 = vrot.slane %v523, 1
        %v525 = vadd.f32 %v523, %v524
        %vm528 = vcmask 1041409
        %v529 = vsel %vm528, %v525, %v504
        %v531 = vadd.f32 %v482, %v529
        %vm532 = vcmask 254976
        %533 = vst.msk [vmem:[#allocation2] sm:$0x3] %vm532, %v531
        %p534 = scmp.eq.s32.totalorder %s24, 3
        // Predicated region
        $region93: #{tpu_custom_call.1} parent=83 // pred_check
          %p535 = pneg %p534
        $region94: #{tpu_custom_call.1} parent=83 // pred_check_branch
          %537 = sbr.rel (%p535) target = $region96
        $region95: #{tpu_custom_call.1} parent=83 // pred_region
          %v538 = vld [vmem:[#allocation2] sm:$0x3]
          %v539 = vmul.f32 %v538, 0.0051020407
          %v540 = vld [vmem:[%s1] sm:$0xff]
          %v541 = vld [vmem:[%s1 + $0x8] sm:$0xff]
          %v542 = vld [vmem:[%s1 + $0x10] sm:$0xff]
          %v543 = vld [vmem:[%s1 + $0x18] sm:$0xff]
          %v545 = vsel %vm483, %v539, 0
          %547 = vmatprep.subr.mxu0 0.0
          %548 = vmatpush1.msra.mxu0 0.0
          %549 = vmatprep.subr.mxu0 0.0
          %550 = vmatpush1.msra.mxu0 0.0
          %551 = vmatprep.subr.mxu0 0.0
          %552 = vmatpush1.msra.mxu0 0.0
          %553 = vmatprep.subr.mxu0 0.0
          %554 = vmatpush1.msra.mxu0 0.0
          %555 = vmatprep.subr.mxu0 0.0
          %556 = vmatpush1.msra.mxu0 0.0
          %557 = vmatprep.subr.mxu0 0.0
          %558 = vmatpush1.msra.mxu0 0.0
          %559 = vmatprep.subr.mxu0 0.0
          %560 = vmatpush1.msra.mxu0 0.0
          %561 = vmatprep.subr.mxu0 0.0
          %562 = vmatpush1.msra.mxu0 0.0
          %563 = vmatprep.subr.mxu0 0.0
          %564 = vmatpush1.msra.mxu0 0.0
          %565 = vmatprep.subr.mxu0 0.0
          %566 = vmatpush1.msra.mxu0 0.0
          %567 = vmatprep.subr.mxu0 0.0
          %568 = vmatpush1.msra.mxu0 0.0
          %569 = vmatprep.subr.mxu0 0.0
          %570 = vmatpush1.msra.mxu0 0.0
          %571 = vmatprep.subr.mxu0 0.0
          %572 = vmatpush1.msra.mxu0 %v543
          %573 = vmatprep.subr.mxu0 0.0
          %574 = vmatpush1.msra.mxu0 %v542
          %575 = vmatprep.subr.mxu0 0.0
          %576 = vmatpush1.msra.mxu0 %v541
          %577 = vmatprep.subr.mxu0 0.0
          %578 = vmatpush1.msra.mxu0 %v540
          %579 = vmatprep.subr.mxu0 0.0
          %580 = vmatpush2.msra.mxu0 0.0
          %581 = vmatprep.subr.mxu0 0.0
          %582 = vmatpush2.msra.mxu0 0.0
          %583 = vmatprep.subr.mxu0 0.0
          %584 = vmatpush2.msra.mxu0 0.0
          %585 = vmatprep.subr.mxu0 0.0
          %586 = vmatpush2.msra.mxu0 0.0
          %587 = vmatprep.subr.mxu0 0.0
          %588 = vmatpush2.msra.mxu0 0.0
          %589 = vmatprep.subr.mxu0 0.0
          %590 = vmatpush2.msra.mxu0 0.0
          %591 = vmatprep.subr.mxu0 0.0
          %592 = vmatpush2.msra.mxu0 0.0
          %593 = vmatprep.subr.mxu0 0.0
          %594 = vmatpush2.msra.mxu0 0.0
          %595 = vmatprep.subr.mxu0 0.0
          %596 = vmatpush2.msra.mxu0 0.0
          %597 = vmatprep.subr.mxu0 0.0
          %598 = vmatpush2.msra.mxu0 0.0
          %599 = vmatprep.subr.mxu0 0.0
          %600 = vmatpush2.msra.mxu0 0.0
          %601 = vmatprep.subr.mxu0 0.0
          %602 = vmatpush2.msra.mxu0 0.0
          %603 = vmatprep.subr.mxu0 0.0
          %604 = vmatpush2.msra.mxu0 0.0
          %605 = vmatprep.subr.mxu0 0.0
          %606 = vmatpush2.msra.mxu0 0.0
          %607 = vmatprep.subr.mxu0 0.0
          %608 = vmatpush2.msra.mxu0 0.0
          %609 = vmatprep.subr.mxu0 0.0
          %610 = vmatpush2.msra.mxu0 0.0
          %611 = vmatprep.mubr.f32.mxu0 0.0
          %612 = vmatmul.mubr.f32.gmra.mxu0 %v545
          %v613 = vpop.f32.mrf.mxu0
          %v614 = vadd.f32 0.0, %v613
          %v615 = vpop.f32.mrf.mxu0
          %616 = vdwg.mxu0
          %v617 = vld [vmem:[%s2] sm:$0x1]
          %v619 = vlaneseq
          %v620 = vshrl.u32 %v619, 7
          %v621 = vsub.s32 0, %v620
          %v622 = vrot.slane %v617, %v621
          %v624 = vadd.f32 %v614, %v622
          %vm625 = vcmask 123904
          %626 = vst.msk [vmem:[#allocation4] sm:$0x3] %vm625, %v624
          %v627 = vld [vmem:[%s3] sm:$0x1]
          %629 = vset.pattern.permute.xlu0 16
          %630 = vperm.xlu0 %629, %v614
          %v631 = vpop.permute.xlu0 %630
          %v634 = vlaneseq
          %v635 = vshrl.u32 %v634, 7
          %v636 = vsub.s32 0, %v635
          %v637 = vrot.slane %v627, %v636
          %v639 = vadd.f32 %v631, %v637
          %vm640 = vcmask 58368
          %641 = vst.msk [vmem:[#allocation6] sm:$0x3] %vm640, %v639
        $region96: #{tpu_custom_call.1} parent=83 // pred_fallthru
          _
        // Predicated region
        $region97: #{tpu_custom_call.1} parent=83 // pred_check
          %p642 = pneg %p140
        $region98: #{tpu_custom_call.1} parent=83 // pred_check_branch
          %644 = sbr.rel (%p642) target = $region100
        $region99: #{tpu_custom_call.1} parent=83 // pred_region
          %s646 = ssub.s32 32, 32
          %647 = vsyncadd [#allocation5], %s646
          %s648 = smul.addr %s23, 32
          %s649 = scalar_lea.hbm %s4, %s648
          %s651 = sshll.u32 [#allocation4], 4
          %s652 = int_to_ptr.vmem [resolvable:$true] %s651
          %654 = dma.vmem_to_hbm [thread:$0]  %s652, 32, %s649, [#allocation5]
        $region100: #{tpu_custom_call.1} parent=83 // pred_fallthru
          _
        // Predicated region
        $region101: #{tpu_custom_call.1} parent=83 // pred_check
          %p655 = pneg %p166
        $region102: #{tpu_custom_call.1} parent=83 // pred_check_branch
          %657 = sbr.rel (%p655) target = $region104
        $region103: #{tpu_custom_call.1} parent=83 // pred_region
          %s659 = ssub.s32 32, 32
          %660 = vsyncadd [#allocation7], %s659
          %s661 = smul.addr %s23, 32
          %s662 = scalar_lea.hbm %s5, %s661
          %s664 = sshll.u32 [#allocation6], 4
          %s665 = int_to_ptr.vmem [resolvable:$true] %s664
          %667 = dma.vmem_to_hbm [thread:$0]  %s665, 32, %s662, [#allocation7]
        $region104: #{tpu_custom_call.1} parent=83 // pred_fallthru
          _
        // Predicated region
        $region105: #{tpu_custom_call.1} parent=83 // pred_check
          %p668 = pneg %p140
        $region106: #{tpu_custom_call.1} parent=83 // pred_check_branch
          %670 = sbr.rel (%p668) target = $region108
        $region107: #{tpu_custom_call.1} parent=83 // pred_region
          %671 = dma.done [#allocation5], 32
        $region108: #{tpu_custom_call.1} parent=83 // pred_fallthru
          _
        // Predicated region
        $region109: #{tpu_custom_call.1} parent=83 // pred_check
          %p672 = pneg %p166
        $region110: #{tpu_custom_call.1} parent=83 // pred_check_branch
          %674 = sbr.rel (%p672) target = $region112
        $region111: #{tpu_custom_call.1} parent=83 // pred_region
          %675 = dma.done [#allocation7], 32
        $region112: #{tpu_custom_call.1} parent=83 // pred_fallthru
          _
      $region84: #{tpu_custom_call.1} parent=5 // pred_fallthru
        _
      %p676 = scmp.le.s32.totalorder 2, %s14
      // Predicated region
      $region113: #{tpu_custom_call.1} parent=5 // pred_check
        %p677 = pneg %p676
      $region114: #{tpu_custom_call.1} parent=5 // pred_check_branch
        %679 = sbr.rel (%p677) target = $region116
      $region115: #{tpu_custom_call.1} parent=5 // pred_region
        %s680 = ssub.s32 %s14, 2
      $region116: #{tpu_custom_call.1} parent=5 // pred_fallthru
        _
    $region6: #{tpu_custom_call.1} parent=1 // loop_footer
      %s18 = sadd.s32 1, %s14
    $region7: #{tpu_custom_call.1} parent=1 // loop_footer_branch
      %13 = sbr.rel target = $region3
    $region8: #{tpu_custom_call.1} parent=1 // loop_exit
      _
    %681 = vsyncpa [#allocation5], 1
    %s682 = scalar_lea.sflag [#allocation5], 1
    %683 = vsyncpa %s682, 1
    %684 = vsyncpa [#allocation7], 1

</llo_original>
